<compile_context>
chip_gen: v6e
topology: v6e:2x2x1
jax: 0.10.0
libtpu: 0.0.40
codegen_flags: <defaults>
</compile_context>

<pallas_src>
import jax
import jax.numpy as jnp
import numpy as np
from jax.experimental import pallas as pl
from jax.experimental.pallas import tpu as pltpu

# ---------------- problem sizes (small, deterministic) ----------------
N = 2
IN_CHANNELS = [4, 8, 16, 32]
SPATIAL = [(16, 16), (8, 8), (4, 4), (2, 2)]
EMBED_DIM = 32
OUT_CHANNELS = 16
H0, W0 = SPATIAL[0]
P0 = H0 * W0
PIX = [h * w for (h, w) in SPATIAL]          # [256, 64, 16, 4]
# offsets of each scale's transposed resize matrix inside the stacked slab
R_OFF1 = 0
R_OFF2 = PIX[1]                              # 64
R_OFF3 = PIX[1] + PIX[2]                     # 80
R_ROWS = PIX[1] + PIX[2] + PIX[3]            # 84


# ---------------- bilinear-resize-as-matrix helpers (wrapper glue) ----------------
def _bilinear_matrix(out_size, in_size):
    """Row-interp matrix matching F.interpolate(mode='bilinear', align_corners=False)."""
    if in_size == out_size:
        return jnp.eye(out_size, dtype=jnp.float32)
    dst = jnp.arange(out_size, dtype=jnp.float32)
    scale = in_size / out_size
    src = jnp.clip((dst + 0.5) * scale - 0.5, 0.0, float(in_size - 1))
    i0 = jnp.floor(src).astype(jnp.int32)
    i1 = jnp.minimum(i0 + 1, in_size - 1)
    frac = src - i0.astype(jnp.float32)
    m = jnp.zeros((out_size, in_size), dtype=jnp.float32)
    rows = jnp.arange(out_size)
    m = m.at[rows, i0].add(1.0 - frac)
    m = m.at[rows, i1].add(frac)
    return m


def _resize_matrix(h_in, w_in):
    """(H0*W0, h_in*w_in) separable bilinear interpolation matrix."""
    return jnp.kron(_bilinear_matrix(H0, h_in), _bilinear_matrix(W0, w_in)).astype(
        jnp.float32
    )


# ---------------- Pallas kernel (one batch element per grid step) ----------------
def fuse_kernel(
    x0, x1, x2, x3,        # per-scale features, blocks (1, C_i, P_i)
    w0, w1, w2, w3,        # folded weights (W_i @ Wf_i)^T, shape (OUT_C, C_i)
    bt,                    # total bias, (OUT_C, 1)
    rt,                    # stacked transposed resize matrices, (84, P0)
    o_ref,                 # output block (1, OUT_C, P0)
):
    f32 = jnp.float32

    # project-then-resize: u_i = W'_i^T @ X_i^T  -> (OUT_C, P_i), pixels on lanes
    u0 = jnp.dot(w0[...], x0[0], preferred_element_type=f32)   # (16, 256) no resize
    u1 = jnp.dot(w1[...], x1[0], preferred_element_type=f32)   # (16, 64)
    u2 = jnp.dot(w2[...], x2[0], preferred_element_type=f32)   # (16, 16)
    u3 = jnp.dot(w3[...], x3[0], preferred_element_type=f32)   # (16, 4)

    # resize via lane-dense (P_i, 256) matmuls against the transposed kron matrices
    acc = u0
    acc = acc + jnp.dot(u1, rt[R_OFF1:R_OFF1 + PIX[1], :], preferred_element_type=f32)
    acc = acc + jnp.dot(u2, rt[R_OFF2:R_OFF2 + PIX[2], :], preferred_element_type=f32)
    acc = acc + jnp.dot(u3, rt[R_OFF3:R_OFF3 + PIX[3], :], preferred_element_type=f32)

    acc = acc + bt[...]                      # (16, 1) broadcast along lanes
    o_ref[0] = jnp.maximum(acc, 0.0)         # ReLU (fuse ConvModule activation)


# ---------------- parameter folding (exact: bilinear rows sum to 1) ----------------
def _fold_params(params):
    folded = {}
    bias = jnp.zeros((OUT_CHANNELS,), jnp.float32)
    for i in range(4):
        wf_i = params["wf"][i * EMBED_DIM:(i + 1) * EMBED_DIM, :]      # (E, OUT)
        folded[f"w{i}t"] = (params[f"w{i}"] @ wf_i).T                  # (OUT, C_i)
        bias = bias + (params[f"b{i}"] @ wf_i).reshape(-1)
    bias = bias + params["bf"].reshape(-1)
    folded["bt"] = bias.reshape(OUT_CHANNELS, 1)
    return folded


# ---------------- wrapper ----------------
def fuse_forward(xs_nchw, params):
    """xs_nchw: list of 4 NCHW arrays. Returns NCHW (N, OUT_CHANNELS, H0, W0)."""
    n = xs_nchw[0].shape[0]
    # NCHW -> (N, C, H*W): pure reshape, no transpose (pixels land on lanes)
    xs = [
        x.reshape(x.shape[0], x.shape[1], x.shape[2] * x.shape[3]).astype(jnp.float32)
        for x in xs_nchw
    ]
    folded = _fold_params(params)
    # transposed + stacked resize matrices: (P_1+P_2+P_3, P0) = (84, 256), lane-dense
    rt = jnp.concatenate(
        [_resize_matrix(h, w).T for (h, w) in SPATIAL[1:]], axis=0
    ).astype(jnp.float32)

    const = lambda i: (0, 0)                 # params / resize slab: same block every step
    grid_spec = pltpu.PrefetchScalarGridSpec(
        num_scalar_prefetch=0,
        grid=(n,),
        in_specs=[
            pl.BlockSpec((1, IN_CHANNELS[0], PIX[0]), lambda i: (i, 0, 0)),
            pl.BlockSpec((1, IN_CHANNELS[1], PIX[1]), lambda i: (i, 0, 0)),
            pl.BlockSpec((1, IN_CHANNELS[2], PIX[2]), lambda i: (i, 0, 0)),
            pl.BlockSpec((1, IN_CHANNELS[3], PIX[3]), lambda i: (i, 0, 0)),
            pl.BlockSpec((OUT_CHANNELS, IN_CHANNELS[0]), const),
            pl.BlockSpec((OUT_CHANNELS, IN_CHANNELS[1]), const),
            pl.BlockSpec((OUT_CHANNELS, IN_CHANNELS[2]), const),
            pl.BlockSpec((OUT_CHANNELS, IN_CHANNELS[3]), const),
            pl.BlockSpec((OUT_CHANNELS, 1), const),
            pl.BlockSpec((R_ROWS, P0), const),
        ],
        out_specs=pl.BlockSpec((1, OUT_CHANNELS, P0), lambda i: (i, 0, 0)),
    )

    out = pl.pallas_call(
        fuse_kernel,
        out_shape=jax.ShapeDtypeStruct((n, OUT_CHANNELS, P0), jnp.float32),
        grid_spec=grid_spec,
        compiler_params=pltpu.CompilerParams(
            dimension_semantics=("parallel",),   # v7x: one batch element per TC
        ),
        cost_estimate=pl.CostEstimate(
            flops=1_500_000, transcendentals=0, bytes_accessed=140_000
        ),
    )(xs[0], xs[1], xs[2], xs[3],
      folded["w0t"], folded["w1t"], folded["w2t"], folded["w3t"],
      folded["bt"], rt)

    # (N, OUT_C, P0) is already NCHW up to a free reshape
    return out.reshape(n, OUT_CHANNELS, H0, W0)


# ---------------- pure-JAX reference (original, unfolded math) ----------------
def fuse_reference(xs_nchw, params):
    n = xs_nchw[0].shape[0]
    embs = []
    for i, x in enumerate(xs_nchw):
        c, h, w = x.shape[1], x.shape[2], x.shape[3]
        t = x.reshape(n, c, h * w).transpose(0, 2, 1).astype(jnp.float32)  # (n, p, c)
        e = t @ params[f"w{i}"] + params[f"b{i}"]                          # (n, p, E)
        e = e.transpose(0, 2, 1)                                           # (n, E, p)
        if (h, w) != (H0, W0):
            rm = _resize_matrix(h, w)                                      # (P0, p)
            e = jnp.einsum("qp,ncp->ncq", rm, e)
        embs.append(e)
    cat = jnp.concatenate(embs, axis=1)                                    # (n, 4E, P0)
    y = jnp.einsum("nkp,kc->ncp", cat, params["wf"]) + params["bf"].reshape(1, -1, 1)
    y = jnp.maximum(y, 0.0)
    return y.reshape(n, OUT_CHANNELS, H0, W0)


# ---------------- main ----------------
if __name__ == "__main__":
    key = jax.random.PRNGKey(0)
    keys = jax.random.split(key, 16)

    # deterministic synthetic parameters (shapes dictated by the module config)
    params = {}
    for i, c in enumerate(IN_CHANNELS):
        params[f"w{i}"] = (
            jax.random.normal(keys[2 * i], (c, EMBED_DIM), jnp.float32) * 0.1
        )
        params[f"b{i}"] = (
            jax.random.normal(keys[2 * i + 1], (1, EMBED_DIM), jnp.float32) * 0.01
        )
    params["wf"] = (
        jax.random.normal(keys[8], (4 * EMBED_DIM, OUT_CHANNELS), jnp.float32) * 0.1
    )
    params["bf"] = (
        jax.random.normal(keys[9], (1, OUT_CHANNELS), jnp.float32) * 0.01
    )

    # deterministic inputs (PyTorch-style NCHW)
    xs = [
        jax.random.normal(keys[10 + i], (N, IN_CHANNELS[i], *SPATIAL[i]), jnp.float32)
        for i in range(4)
    ]

    out = jax.block_until_ready(fuse_forward(xs, params))
    ref = jax.block_until_ready(fuse_reference(xs, params))
    np.testing.assert_allclose(np.asarray(out), np.asarray(ref), rtol=1e-4, atol=1e-4)

    print("KERNEL_OK")
</pallas_src>

<mosaic_0001>
module attributes {stable_mosaic.version = 11 : i64} {
  func.func @fuse_kernel(%arg0: i32, %arg1: memref<1x4x256xf32, #tpu.memory_space<vmem>>, %arg2: memref<1x8x64xf32, #tpu.memory_space<vmem>>, %arg3: memref<1x16x16xf32, #tpu.memory_space<vmem>>, %arg4: memref<1x32x4xf32, #tpu.memory_space<vmem>>, %arg5: memref<16x4xf32, #tpu.memory_space<vmem>>, %arg6: memref<16x8xf32, #tpu.memory_space<vmem>>, %arg7: memref<16x16xf32, #tpu.memory_space<vmem>>, %arg8: memref<16x32xf32, #tpu.memory_space<vmem>>, %arg9: memref<16x1xf32, #tpu.memory_space<vmem>>, %arg10: memref<84x256xf32, #tpu.memory_space<vmem>>, %arg11: memref<1x16x256xf32, #tpu.memory_space<vmem>>) attributes {dimension_semantics = [#tpu.dimension_semantics<parallel>], iteration_bounds = array<i64: 2>, scalar_prefetch = 0 : i64, scratch_operands = 0 : i64, tpu.core_type = #tpu.core_type<tc>, window_params = [{transform_indices = @transform_0, window_bounds = array<i64: 1, 4, 256>}, {transform_indices = @transform_1, window_bounds = array<i64: 1, 8, 64>}, {transform_indices = @transform_2, window_bounds = array<i64: 1, 16, 16>}, {transform_indices = @transform_3, window_bounds = array<i64: 1, 32, 4>}, {pipeline_mode = #tpu.pipeline_mode<synchronous>, transform_indices = @transform_4, window_bounds = array<i64: 16, 4>}, {pipeline_mode = #tpu.pipeline_mode<synchronous>, transform_indices = @transform_5, window_bounds = array<i64: 16, 8>}, {pipeline_mode = #tpu.pipeline_mode<synchronous>, transform_indices = @transform_6, window_bounds = array<i64: 16, 16>}, {pipeline_mode = #tpu.pipeline_mode<synchronous>, transform_indices = @transform_7, window_bounds = array<i64: 16, 32>}, {pipeline_mode = #tpu.pipeline_mode<synchronous>, transform_indices = @transform_8, window_bounds = array<i64: 16, 1>}, {pipeline_mode = #tpu.pipeline_mode<synchronous>, transform_indices = @transform_9, window_bounds = array<i64: 84, 256>}, {transform_indices = @transform_10, window_bounds = array<i64: 1, 16, 256>}]} {
    %c0 = arith.constant 0 : index
    %c0_0 = arith.constant 0 : index
    %0 = vector.load %arg5[%c0, %c0_0] : memref<16x4xf32, #tpu.memory_space<vmem>>, vector<16x4xf32>
    %c0_1 = arith.constant 0 : index
    %c0_2 = arith.constant 0 : index
    %c0_3 = arith.constant 0 : index
    %1 = vector.load %arg1[%c0_1, %c0_2, %c0_3] : memref<1x4x256xf32, #tpu.memory_space<vmem>>, vector<1x4x256xf32>
    %2 = vector.shape_cast %1 : vector<1x4x256xf32> to vector<4x256xf32>
    %cst = arith.constant dense<0.000000e+00> : vector<16x256xf32>
    %3 = tpu.matmul %0, %2, %cst {dimension_numbers = #tpu.dot_dimension_numbers<[1], [0], [0], [1], [0, 0, 1, 1], [], []>} : vector<16x4xf32>, vector<4x256xf32>, vector<16x256xf32> -> vector<16x256xf32>
    %c0_4 = arith.constant 0 : index
    %c0_5 = arith.constant 0 : index
    %4 = vector.load %arg6[%c0_4, %c0_5] : memref<16x8xf32, #tpu.memory_space<vmem>>, vector<16x8xf32>
    %c0_6 = arith.constant 0 : index
    %c0_7 = arith.constant 0 : index
    %c0_8 = arith.constant 0 : index
    %5 = vector.load %arg2[%c0_6, %c0_7, %c0_8] : memref<1x8x64xf32, #tpu.memory_space<vmem>>, vector<1x8x64xf32>
    %6 = vector.shape_cast %5 : vector<1x8x64xf32> to vector<8x64xf32>
    %cst_9 = arith.constant dense<0.000000e+00> : vector<16x64xf32>
    %7 = tpu.matmul %4, %6, %cst_9 {dimension_numbers = #tpu.dot_dimension_numbers<[1], [0], [0], [1], [0, 0, 1, 1], [], []>} : vector<16x8xf32>, vector<8x64xf32>, vector<16x64xf32> -> vector<16x64xf32>
    %c0_10 = arith.constant 0 : index
    %c0_11 = arith.constant 0 : index
    %8 = vector.load %arg7[%c0_10, %c0_11] : memref<16x16xf32, #tpu.memory_space<vmem>>, vector<16x16xf32>
    %c0_12 = arith.constant 0 : index
    %c0_13 = arith.constant 0 : index
    %c0_14 = arith.constant 0 : index
    %9 = vector.load %arg3[%c0_12, %c0_13, %c0_14] : memref<1x16x16xf32, #tpu.memory_space<vmem>>, vector<1x16x16xf32>
    %10 = vector.shape_cast %9 : vector<1x16x16xf32> to vector<16x16xf32>
    %cst_15 = arith.constant dense<0.000000e+00> : vector<16x16xf32>
    %11 = tpu.matmul %8, %10, %cst_15 {dimension_numbers = #tpu.dot_dimension_numbers<[1], [0], [0], [1], [0, 0, 1, 1], [], []>} : vector<16x16xf32>, vector<16x16xf32>, vector<16x16xf32> -> vector<16x16xf32>
    %c0_16 = arith.constant 0 : index
    %c0_17 = arith.constant 0 : index
    %12 = vector.load %arg8[%c0_16, %c0_17] : memref<16x32xf32, #tpu.memory_space<vmem>>, vector<16x32xf32>
    %c0_18 = arith.constant 0 : index
    %c0_19 = arith.constant 0 : index
    %c0_20 = arith.constant 0 : index
    %13 = vector.load %arg4[%c0_18, %c0_19, %c0_20] : memref<1x32x4xf32, #tpu.memory_space<vmem>>, vector<1x32x4xf32>
    %14 = vector.shape_cast %13 : vector<1x32x4xf32> to vector<32x4xf32>
    %cst_21 = arith.constant dense<0.000000e+00> : vector<16x4xf32>
    %15 = tpu.matmul %12, %14, %cst_21 {dimension_numbers = #tpu.dot_dimension_numbers<[1], [0], [0], [1], [0, 0, 1, 1], [], []>} : vector<16x32xf32>, vector<32x4xf32>, vector<16x4xf32> -> vector<16x4xf32>
    %c0_22 = arith.constant 0 : index
    %c0_23 = arith.constant 0 : index
    %16 = vector.load %arg10[%c0_22, %c0_23] : memref<84x256xf32, #tpu.memory_space<vmem>>, vector<64x256xf32>
    %cst_24 = arith.constant dense<0.000000e+00> : vector<16x256xf32>
    %17 = tpu.matmul %7, %16, %cst_24 {dimension_numbers = #tpu.dot_dimension_numbers<[1], [0], [0], [1], [0, 0, 1, 1], [], []>} : vector<16x64xf32>, vector<64x256xf32>, vector<16x256xf32> -> vector<16x256xf32>
    %18 = arith.addf %3, %17 : vector<16x256xf32>
    %c64 = arith.constant 64 : index
    %c0_25 = arith.constant 0 : index
    %19 = vector.load %arg10[%c64, %c0_25] : memref<84x256xf32, #tpu.memory_space<vmem>>, vector<16x256xf32>
    %cst_26 = arith.constant dense<0.000000e+00> : vector<16x256xf32>
    %20 = tpu.matmul %11, %19, %cst_26 {dimension_numbers = #tpu.dot_dimension_numbers<[1], [0], [0], [1], [0, 0, 1, 1], [], []>} : vector<16x16xf32>, vector<16x256xf32>, vector<16x256xf32> -> vector<16x256xf32>
    %21 = arith.addf %18, %20 : vector<16x256xf32>
    %c80 = arith.constant 80 : index
    %c0_27 = arith.constant 0 : index
    %22 = vector.load %arg10[%c80, %c0_27] : memref<84x256xf32, #tpu.memory_space<vmem>>, vector<4x256xf32>
    %cst_28 = arith.constant dense<0.000000e+00> : vector<16x256xf32>
    %23 = tpu.matmul %15, %22, %cst_28 {dimension_numbers = #tpu.dot_dimension_numbers<[1], [0], [0], [1], [0, 0, 1, 1], [], []>} : vector<16x4xf32>, vector<4x256xf32>, vector<16x256xf32> -> vector<16x256xf32>
    %24 = arith.addf %21, %23 : vector<16x256xf32>
    %c0_29 = arith.constant 0 : index
    %c0_30 = arith.constant 0 : index
    %25 = vector.load %arg9[%c0_29, %c0_30] : memref<16x1xf32, #tpu.memory_space<vmem>>, vector<16x1xf32>
    %26 = vector.broadcast %25 : vector<16x1xf32> to vector<16x256xf32>
    %27 = arith.addf %24, %26 : vector<16x256xf32>
    %cst_31 = arith.constant 0.000000e+00 : f32
    %28 = vector.broadcast %cst_31 : f32 to vector<16x256xf32>
    %29 = arith.maximumf %27, %28 : vector<16x256xf32>
    %c0_32 = arith.constant 0 : index
    %c0_33 = arith.constant 0 : index
    %c0_34 = arith.constant 0 : index
    %30 = vector.load %arg11[%c0_32, %c0_33, %c0_34] : memref<1x16x256xf32, #tpu.memory_space<vmem>>, vector<1x16x256xf32>
    %31 = vector.shape_cast %30 : vector<1x16x256xf32> to vector<16x256xf32>
    %32 = vector.shape_cast %29 : vector<16x256xf32> to vector<1x16x256xf32>
    tpu.vector_store %arg11[%c0_32, %c0_33, %c0_34], %32 {strides = array<i32>} : memref<1x16x256xf32, #tpu.memory_space<vmem>>, vector<1x16x256xf32>,
    return
  }
  func.func @transform_0(%arg0: i32) -> (i32, i32, i32) {
    %c0_i32 = arith.constant 0 : i32
    %c0_i32_0 = arith.constant 0 : i32
    %c0_i32_1 = arith.constant 0 : i32
    return %arg0, %c0_i32, %c0_i32_0 : i32, i32, i32
  }
  func.func @transform_1(%arg0: i32) -> (i32, i32, i32) {
    %c0_i32 = arith.constant 0 : i32
    %c0_i32_0 = arith.constant 0 : i32
    %c0_i32_1 = arith.constant 0 : i32
    return %arg0, %c0_i32, %c0_i32_0 : i32, i32, i32
  }
  func.func @transform_2(%arg0: i32) -> (i32, i32, i32) {
    %c0_i32 = arith.constant 0 : i32
    %c0_i32_0 = arith.constant 0 : i32
    %c0_i32_1 = arith.constant 0 : i32
    return %arg0, %c0_i32, %c0_i32_0 : i32, i32, i32
  }
  func.func @transform_3(%arg0: i32) -> (i32, i32, i32) {
    %c0_i32 = arith.constant 0 : i32
    %c0_i32_0 = arith.constant 0 : i32
    %c0_i32_1 = arith.constant 0 : i32
    return %arg0, %c0_i32, %c0_i32_0 : i32, i32, i32
  }
  func.func @transform_4(%arg0: i32) -> (i32, i32) {
    %c0_i32 = arith.constant 0 : i32
    %c0_i32_0 = arith.constant 0 : i32
    %c0_i32_1 = arith.constant 0 : i32
    return %c0_i32, %c0_i32_0 : i32, i32
  }
  func.func @transform_5(%arg0: i32) -> (i32, i32) {
    %c0_i32 = arith.constant 0 : i32
    %c0_i32_0 = arith.constant 0 : i32
    %c0_i32_1 = arith.constant 0 : i32
    return %c0_i32, %c0_i32_0 : i32, i32
  }
  func.func @transform_6(%arg0: i32) -> (i32, i32) {
    %c0_i32 = arith.constant 0 : i32
    %c0_i32_0 = arith.constant 0 : i32
    %c0_i32_1 = arith.constant 0 : i32
    return %c0_i32, %c0_i32_0 : i32, i32
  }
  func.func @transform_7(%arg0: i32) -> (i32, i32) {
    %c0_i32 = arith.constant 0 : i32
    %c0_i32_0 = arith.constant 0 : i32
    %c0_i32_1 = arith.constant 0 : i32
    return %c0_i32, %c0_i32_0 : i32, i32
  }
  func.func @transform_8(%arg0: i32) -> (i32, i32) {
    %c0_i32 = arith.constant 0 : i32
    %c0_i32_0 = arith.constant 0 : i32
    %c0_i32_1 = arith.constant 0 : i32
    return %c0_i32, %c0_i32_0 : i32, i32
  }
  func.func @transform_9(%arg0: i32) -> (i32, i32) {
    %c0_i32 = arith.constant 0 : i32
    %c0_i32_0 = arith.constant 0 : i32
    %c0_i32_1 = arith.constant 0 : i32
    return %c0_i32, %c0_i32_0 : i32, i32
  }
  func.func @transform_10(%arg0: i32) -> (i32, i32, i32) {
    %c0_i32 = arith.constant 0 : i32
    %c0_i32_0 = arith.constant 0 : i32
    %c0_i32_1 = arith.constant 0 : i32
    return %arg0, %c0_i32, %c0_i32_0 : i32, i32, i32
  }
}

</mosaic_0001>

<llo_original>
// kernel: tpu_custom_call.1
$region0: #{tpu_custom_call.1}
  #allocation0 [shape = 'u32[]', space=smem, size = 0x4, offset = 0x4, fixed_abs, tag = 'smem constant byte address 0x4 - core index']
  #allocation1 [shape = 'u32[144,128]{1,0:T(1,128)}', space=vmem, size = 0x12000, scoped, tag = 'internal scratch']
  %s0 = inlined_call_operand.vmem [shape: f32[2,4,256], index: 0, kind: input, shape index: {}]
  %s1 = inlined_call_operand.vmem [shape: f32[2,8,64], index: 1, kind: input, shape index: {}]
  %s2 = inlined_call_operand.vmem [shape: f32[2,16,16], index: 2, kind: input, shape index: {}]
  %s3 = inlined_call_operand.vmem [shape: f32[2,32,4], index: 3, kind: input, shape index: {}]
  %s4 = inlined_call_operand.vmem [shape: f32[16,4], index: 4, kind: input, shape index: {}]
  %s5 = inlined_call_operand.vmem [shape: f32[16,8], index: 5, kind: input, shape index: {}]
  %s6 = inlined_call_operand.vmem [shape: f32[16,16], index: 6, kind: input, shape index: {}]
  %s7 = inlined_call_operand.vmem [shape: f32[16,32], index: 7, kind: input, shape index: {}]
  %s8 = inlined_call_operand.vmem [shape: f32[16,1], index: 8, kind: input, shape index: {}]
  %s9 = inlined_call_operand.hbm [shape: f32[84,256], index: 9, kind: input, shape index: {}]
  %s10 = inlined_call_operand.hbm [shape: f32[2,16,256], index: 10, kind: output, shape index: {}]
  %s11 = sld [smem:[#allocation0]]
  $region77: #{tpu_custom_call.1} parent=0
    _
  %s13 = ssub.s32 1, %s11
  %s14 = scalar_select 0, %s13, %s11
  $region1: #{tpu_custom_call.1} parent=0
    #allocation2 [shape = 'u8[90112]{0}', space=vmem, size = 0x16000, scoped, tag = 'input window, operand 9, single buffered']
    #allocation3 [shape = 's32[2]{0}', space=sflag, size = 0x8, scoped, tag = 'scoped memory for tpu_custom_call.1']
    #allocation4 [shape = 's32[2]{0}', space=sflag, size = 0x8, scoped, tag = 'scoped memory for tpu_custom_call.1']
    #allocation5 [shape = 'u8[32768]{0}', space=vmem, size = 0x8000, scoped, tag = 'output window, operand 0']
    %15 = vsyncpa [#allocation3], 0
    %16 = vsyncpa [#allocation4], 0
    %s17 = scalar_lea.sflag [#allocation4], 1
    %18 = vsyncpa %s17, 0
    loop: start=0, step=1, limit=4
    $region2: #{tpu_custom_call.1} parent=1 // loop_pre_header
      _
    $region3: #{tpu_custom_call.1} parent=1 // loop_header
      %s20 = sphi 0, %s24
      %p21 = scmp.ge.s32.totalorder %s20, 4
      %s30 = sphi 0, %s32
      %s33 = sphi 0, %s30
      %s34 = sphi 0, %s33
      %s50 = sphi 0, %s34
      %s56 = sphi 0, %s58
      %s59 = sphi 0, %s56
      %s60 = sphi 0, %s59
      %s76 = sphi 0, %s60
      %s82 = sphi 0, %s84
      %s85 = sphi 0, %s82
      %s86 = sphi 0, %s85
      %s102 = sphi 0, %s86
      %s108 = sphi 0, %s110
      %s111 = sphi 0, %s108
      %s112 = sphi 0, %s111
      %s128 = sphi 0, %s112
      %s132 = sphi 0, %s132
      %s134 = sphi 0, %s132
      %s135 = sphi 0, %s134
      %s149 = sphi 0, %s135
      %s153 = sphi 0, %s153
      %s155 = sphi 0, %s153
      %s156 = sphi 0, %s155
      %s170 = sphi 0, %s156
      %s174 = sphi 0, %s174
      %s176 = sphi 0, %s174
      %s177 = sphi 0, %s176
      %s191 = sphi 0, %s177
      %s195 = sphi 0, %s195
      %s197 = sphi 0, %s195
      %s198 = sphi 0, %s197
      %s212 = sphi 0, %s198
      %s216 = sphi 0, %s216
      %s218 = sphi 0, %s216
      %s219 = sphi 0, %s218
      %s233 = sphi 0, %s219
      %s237 = sphi 0, %s237
      %s239 = sphi 0, %s237
      %s240 = sphi 0, %s239
      %s254 = sphi 0, %s240
      %s260 = sphi 0, %s262
      %s263 = sphi 0, %s260
      %s264 = sphi 0, %s263
      %s280 = sphi 0, %s264
    $region4: #{tpu_custom_call.1} parent=1 // loop_header_branch
      %23 = sbr.rel (%p21) target = $region8
    $region5: #{tpu_custom_call.1} parent=1 // loop_body
      %s25 = ssub.s32 %s20, 1
      %s26 = ssub.s32 %s20, 2
      %s27 = sadd.s32 %s20, 1
      %s28 = ssub.s32 %s20, %s27
      %p29 = scmp.eq.s32.totalorder %s28, 0
      %s31 = sadd.s32 %s30, 1
      %s32 = scalar_select %p29, %s30, %s31
      %p35 = pneg %p29
      %p36 = scmp.eq.s32.totalorder %s20, 1
      %p37 = por %p35, %p36
      %p38 = scmp.ne.s32.totalorder %s30, %s33
      %p39 = scmp.eq.s32.totalorder %s20, 0
      %p40 = por %p38, %p39
      %p41 = scmp.ne.s32.totalorder %s30, %s33
      %p42 = scmp.eq.s32.totalorder %s25, 1
      %p43 = por %p41, %p42
      %p44 = scmp.ne.s32.totalorder %s33, %s34
      %p45 = scmp.eq.s32.totalorder %s25, 0
      %p46 = por %p44, %p45
      %p47 = scmp.ne.s32.totalorder %s33, %s34
      %p48 = scmp.eq.s32.totalorder %s26, 1
      %p49 = por %p47, %p48
      %p51 = scmp.ne.s32.totalorder %s34, %s50
      %p52 = scmp.eq.s32.totalorder %s26, 0
      %p53 = por %p51, %p52
      %s54 = ssub.s32 %s20, %s27
      %p55 = scmp.eq.s32.totalorder %s54, 0
      %s57 = sadd.s32 %s56, 1
      %s58 = scalar_select %p55, %s56, %s57
      %p61 = pneg %p55
      %p62 = scmp.eq.s32.totalorder %s20, 1
      %p63 = por %p61, %p62
      %p64 = scmp.ne.s32.totalorder %s56, %s59
      %p65 = scmp.eq.s32.totalorder %s20, 0
      %p66 = por %p64, %p65
      %p67 = scmp.ne.s32.totalorder %s56, %s59
      %p68 = scmp.eq.s32.totalorder %s25, 1
      %p69 = por %p67, %p68
      %p70 = scmp.ne.s32.totalorder %s59, %s60
      %p71 = scmp.eq.s32.totalorder %s25, 0
      %p72 = por %p70, %p71
      %p73 = scmp.ne.s32.totalorder %s59, %s60
      %p74 = scmp.eq.s32.totalorder %s26, 1
      %p75 = por %p73, %p74
      %p77 = scmp.ne.s32.totalorder %s60, %s76
      %p78 = scmp.eq.s32.totalorder %s26, 0
      %p79 = por %p77, %p78
      %s80 = ssub.s32 %s20, %s27
      %p81 = scmp.eq.s32.totalorder %s80, 0
      %s83 = sadd.s32 %s82, 1
      %s84 = scalar_select %p81, %s82, %s83
      %p87 = pneg %p81
      %p88 = scmp.eq.s32.totalorder %s20, 1
      %p89 = por %p87, %p88
      %p90 = scmp.ne.s32.totalorder %s82, %s85
      %p91 = scmp.eq.s32.totalorder %s20, 0
      %p92 = por %p90, %p91
      %p93 = scmp.ne.s32.totalorder %s82, %s85
      %p94 = scmp.eq.s32.totalorder %s25, 1
      %p95 = por %p93, %p94
      %p96 = scmp.ne.s32.totalorder %s85, %s86
      %p97 = scmp.eq.s32.totalorder %s25, 0
      %p98 = por %p96, %p97
      %p99 = scmp.ne.s32.totalorder %s85, %s86
      %p100 = scmp.eq.s32.totalorder %s26, 1
      %p101 = por %p99, %p100
      %p103 = scmp.ne.s32.totalorder %s86, %s102
      %p104 = scmp.eq.s32.totalorder %s26, 0
      %p105 = por %p103, %p104
      %s106 = ssub.s32 %s20, %s27
      %p107 = scmp.eq.s32.totalorder %s106, 0
      %s109 = sadd.s32 %s108, 1
      %s110 = scalar_select %p107, %s108, %s109
      %p113 = pneg %p107
      %p114 = scmp.eq.s32.totalorder %s20, 1
      %p115 = por %p113, %p114
      %p116 = scmp.ne.s32.totalorder %s108, %s111
      %p117 = scmp.eq.s32.totalorder %s20, 0
      %p118 = por %p116, %p117
      %p119 = scmp.ne.s32.totalorder %s108, %s111
      %p120 = scmp.eq.s32.totalorder %s25, 1
      %p121 = por %p119, %p120
      %p122 = scmp.ne.s32.totalorder %s111, %s112
      %p123 = scmp.eq.s32.totalorder %s25, 0
      %p124 = por %p122, %p123
      %p125 = scmp.ne.s32.totalorder %s111, %s112
      %p126 = scmp.eq.s32.totalorder %s26, 1
      %p127 = por %p125, %p126
      %p129 = scmp.ne.s32.totalorder %s112, %s128
      %p130 = scmp.eq.s32.totalorder %s26, 0
      %p131 = por %p129, %p130
      %s133 = sadd.s32 %s132, 1
      %p136 = scmp.eq.s32.totalorder %s20, 1
      %p137 = scmp.ne.s32.totalorder %s132, %s134
      %p138 = scmp.eq.s32.totalorder %s20, 0
      %p139 = por %p137, %p138
      %p140 = scmp.ne.s32.totalorder %s132, %s134
      %p141 = scmp.eq.s32.totalorder %s25, 1
      %p142 = por %p140, %p141
      %p143 = scmp.ne.s32.totalorder %s134, %s135
      %p144 = scmp.eq.s32.totalorder %s25, 0
      %p145 = por %p143, %p144
      %p146 = scmp.ne.s32.totalorder %s134, %s135
      %p147 = scmp.eq.s32.totalorder %s26, 1
      %p148 = por %p146, %p147
      %p150 = scmp.ne.s32.totalorder %s135, %s149
      %p151 = scmp.eq.s32.totalorder %s26, 0
      %p152 = por %p150, %p151
      %s154 = sadd.s32 %s153, 1
      %p157 = scmp.eq.s32.totalorder %s20, 1
      %p158 = scmp.ne.s32.totalorder %s153, %s155
      %p159 = scmp.eq.s32.totalorder %s20, 0
      %p160 = por %p158, %p159
      %p161 = scmp.ne.s32.totalorder %s153, %s155
      %p162 = scmp.eq.s32.totalorder %s25, 1
      %p163 = por %p161, %p162
      %p164 = scmp.ne.s32.totalorder %s155, %s156
      %p165 = scmp.eq.s32.totalorder %s25, 0
      %p166 = por %p164, %p165
      %p167 = scmp.ne.s32.totalorder %s155, %s156
      %p168 = scmp.eq.s32.totalorder %s26, 1
      %p169 = por %p167, %p168
      %p171 = scmp.ne.s32.totalorder %s156, %s170
      %p172 = scmp.eq.s32.totalorder %s26, 0
      %p173 = por %p171, %p172
      %s175 = sadd.s32 %s174, 1
      %p178 = scmp.eq.s32.totalorder %s20, 1
      %p179 = scmp.ne.s32.totalorder %s174, %s176
      %p180 = scmp.eq.s32.totalorder %s20, 0
      %p181 = por %p179, %p180
      %p182 = scmp.ne.s32.totalorder %s174, %s176
      %p183 = scmp.eq.s32.totalorder %s25, 1
      %p184 = por %p182, %p183
      %p185 = scmp.ne.s32.totalorder %s176, %s177
      %p186 = scmp.eq.s32.totalorder %s25, 0
      %p187 = por %p185, %p186
      %p188 = scmp.ne.s32.totalorder %s176, %s177
      %p189 = scmp.eq.s32.totalorder %s26, 1
      %p190 = por %p188, %p189
      %p192 = scmp.ne.s32.totalorder %s177, %s191
      %p193 = scmp.eq.s32.totalorder %s26, 0
      %p194 = por %p192, %p193
      %s196 = sadd.s32 %s195, 1
      %p199 = scmp.eq.s32.totalorder %s20, 1
      %p200 = scmp.ne.s32.totalorder %s195, %s197
      %p201 = scmp.eq.s32.totalorder %s20, 0
      %p202 = por %p200, %p201
      %p203 = scmp.ne.s32.totalorder %s195, %s197
      %p204 = scmp.eq.s32.totalorder %s25, 1
      %p205 = por %p203, %p204
      %p206 = scmp.ne.s32.totalorder %s197, %s198
      %p207 = scmp.eq.s32.totalorder %s25, 0
      %p208 = por %p206, %p207
      %p209 = scmp.ne.s32.totalorder %s197, %s198
      %p210 = scmp.eq.s32.totalorder %s26, 1
      %p211 = por %p209, %p210
      %p213 = scmp.ne.s32.totalorder %s198, %s212
      %p214 = scmp.eq.s32.totalorder %s26, 0
      %p215 = por %p213, %p214
      %s217 = sadd.s32 %s216, 1
      %p220 = scmp.eq.s32.totalorder %s20, 1
      %p221 = scmp.ne.s32.totalorder %s216, %s218
      %p222 = scmp.eq.s32.totalorder %s20, 0
      %p223 = por %p221, %p222
      %p224 = scmp.ne.s32.totalorder %s216, %s218
      %p225 = scmp.eq.s32.totalorder %s25, 1
      %p226 = por %p224, %p225
      %p227 = scmp.ne.s32.totalorder %s218, %s219
      %p228 = scmp.eq.s32.totalorder %s25, 0
      %p229 = por %p227, %p228
      %p230 = scmp.ne.s32.totalorder %s218, %s219
      %p231 = scmp.eq.s32.totalorder %s26, 1
      %p232 = por %p230, %p231
      %p234 = scmp.ne.s32.totalorder %s219, %s233
      %p235 = scmp.eq.s32.totalorder %s26, 0
      %p236 = por %p234, %p235
      %s238 = sadd.s32 %s237, 1
      %p241 = scmp.eq.s32.totalorder %s20, 1
      %p242 = scmp.ne.s32.totalorder %s237, %s239
      %p243 = scmp.eq.s32.totalorder %s20, 0
      %p244 = por %p242, %p243
      %p245 = scmp.ne.s32.totalorder %s237, %s239
      %p246 = scmp.eq.s32.totalorder %s25, 1
      %p247 = por %p245, %p246
      %p248 = scmp.ne.s32.totalorder %s239, %s240
      %p249 = scmp.eq.s32.totalorder %s25, 0
      %p250 = por %p248, %p249
      %p251 = scmp.ne.s32.totalorder %s239, %s240
      %p252 = scmp.eq.s32.totalorder %s26, 1
      %p253 = por %p251, %p252
      %p255 = scmp.ne.s32.totalorder %s240, %s254
      %p256 = scmp.eq.s32.totalorder %s26, 0
      %p257 = por %p255, %p256
      %s258 = ssub.s32 %s20, %s27
      %p259 = scmp.eq.s32.totalorder %s258, 0
      %s261 = sadd.s32 %s260, 1
      %s262 = scalar_select %p259, %s260, %s261
      %p265 = pneg %p259
      %p266 = scmp.eq.s32.totalorder %s20, 1
      %p267 = por %p265, %p266
      %p268 = scmp.ne.s32.totalorder %s260, %s263
      %p269 = scmp.eq.s32.totalorder %s20, 0
      %p270 = por %p268, %p269
      %p271 = scmp.ne.s32.totalorder %s260, %s263
      %p272 = scmp.eq.s32.totalorder %s25, 1
      %p273 = por %p271, %p272
      %p274 = scmp.ne.s32.totalorder %s263, %s264
      %p275 = scmp.eq.s32.totalorder %s25, 0
      %p276 = por %p274, %p275
      %p277 = scmp.ne.s32.totalorder %s263, %s264
      %p278 = scmp.eq.s32.totalorder %s26, 1
      %p279 = por %p277, %p278
      %p281 = scmp.ne.s32.totalorder %s264, %s280
      %p282 = scmp.eq.s32.totalorder %s26, 0
      %p283 = por %p281, %p282
      %p284 = scmp.le.s32.totalorder 1, %s20
      %p285 = scmp.lt.s32.totalorder %s20, 3
      %p286 = pnand %p284, %p285
      %p287 = pneg %p286
      // Predicated region
      $region9: #{tpu_custom_call.1} parent=5 // pred_check
        _
      $region10: #{tpu_custom_call.1} parent=5 // pred_check_branch
        %289 = sbr.rel (%p286) target = $region12
      $region11: #{tpu_custom_call.1} parent=5 // pred_region
        %s290 = ssub.s32 %s20, 1
        // Predicated region
        $region13: #{tpu_custom_call.1} parent=11 // pred_check
          %p291 = pneg %p145
        $region14: #{tpu_custom_call.1} parent=11 // pred_check_branch
          %293 = sbr.rel (%p291) target = $region16
        $region15: #{tpu_custom_call.1} parent=11 // pred_region
          _
        $region16: #{tpu_custom_call.1} parent=11 // pred_fallthru
          _
        // Predicated region
        $region17: #{tpu_custom_call.1} parent=11 // pred_check
          %p294 = pneg %p166
        $region18: #{tpu_custom_call.1} parent=11 // pred_check_branch
          %296 = sbr.rel (%p294) target = $region20
        $region19: #{tpu_custom_call.1} parent=11 // pred_region
          _
        $region20: #{tpu_custom_call.1} parent=11 // pred_fallthru
          _
        // Predicated region
        $region21: #{tpu_custom_call.1} parent=11 // pred_check
          %p297 = pneg %p187
        $region22: #{tpu_custom_call.1} parent=11 // pred_check_branch
          %299 = sbr.rel (%p297) target = $region24
        $region23: #{tpu_custom_call.1} parent=11 // pred_region
          _
        $region24: #{tpu_custom_call.1} parent=11 // pred_fallthru
          _
        // Predicated region
        $region25: #{tpu_custom_call.1} parent=11 // pred_check
          %p300 = pneg %p208
        $region26: #{tpu_custom_call.1} parent=11 // pred_check_branch
          %302 = sbr.rel (%p300) target = $region28
        $region27: #{tpu_custom_call.1} parent=11 // pred_region
          _
        $region28: #{tpu_custom_call.1} parent=11 // pred_fallthru
          _
        // Predicated region
        $region29: #{tpu_custom_call.1} parent=11 // pred_check
          %p303 = pneg %p229
        $region30: #{tpu_custom_call.1} parent=11 // pred_check_branch
          %305 = sbr.rel (%p303) target = $region32
        $region31: #{tpu_custom_call.1} parent=11 // pred_region
          _
        $region32: #{tpu_custom_call.1} parent=11 // pred_fallthru
          _
        // Predicated region
        $region33: #{tpu_custom_call.1} parent=11 // pred_check
          %p306 = pneg %p250
        $region34: #{tpu_custom_call.1} parent=11 // pred_check_branch
          %308 = sbr.rel (%p306) target = $region36
        $region35: #{tpu_custom_call.1} parent=11 // pred_region
          %s310 = ssub.s32 2816, 2816
          %311 = vsyncadd [#allocation3], %s310
          %s312 = sshll.u32 [#allocation2], 4
          %s313 = int_to_ptr.vmem [resolvable:$true] %s312
          %318 = dma.hbm_to_vmem [thread:$0]  %s9, 2816, %s313, [#allocation3], 256, 256, 16
        $region36: #{tpu_custom_call.1} parent=11 // pred_fallthru
          _
      $region12: #{tpu_custom_call.1} parent=5 // pred_fallthru
        _
      %p319 = scmp.lt.s32.totalorder %s20, 2
      // Predicated region
      $region37: #{tpu_custom_call.1} parent=5 // pred_check
        %p320 = pneg %p319
      $region38: #{tpu_custom_call.1} parent=5 // pred_check_branch
        %322 = sbr.rel (%p320) target = $region40
      $region39: #{tpu_custom_call.1} parent=5 // pred_region
        // Predicated region
        $region41: #{tpu_custom_call.1} parent=39 // pred_check
          %p323 = pneg %p40
        $region42: #{tpu_custom_call.1} parent=39 // pred_check_branch
          %325 = sbr.rel (%p323) target = $region44
        $region43: #{tpu_custom_call.1} parent=39 // pred_region
          %p326 = scmp.lt.s32.totalorder %s20, 1
          %s327 = scalar_select %p326, %s20, 1
          %s328 = smul.addr %s327, 2
          %s329 = smul.addr %s328, 4
          %s330 = scalar_lea.vmem %s0, %s329
        $region44: #{tpu_custom_call.1} parent=39 // pred_fallthru
          _
        // Predicated region
        $region45: #{tpu_custom_call.1} parent=39 // pred_check
          %p331 = pneg %p66
        $region46: #{tpu_custom_call.1} parent=39 // pred_check_branch
          %333 = sbr.rel (%p331) target = $region48
        $region47: #{tpu_custom_call.1} parent=39 // pred_region
          %p334 = scmp.lt.s32.totalorder %s20, 1
          %s335 = scalar_select %p334, %s20, 1
          %s336 = smul.addr %s335, 8
          %s337 = scalar_lea.vmem %s1, %s336
        $region48: #{tpu_custom_call.1} parent=39 // pred_fallthru
          _
        // Predicated region
        $region49: #{tpu_custom_call.1} parent=39 // pred_check
          %p338 = pneg %p92
        $region50: #{tpu_custom_call.1} parent=39 // pred_check_branch
          %340 = sbr.rel (%p338) target = $region52
        $region51: #{tpu_custom_call.1} parent=39 // pred_region
          %p341 = scmp.lt.s32.totalorder %s20, 1
          %s342 = scalar_select %p341, %s20, 1
          %s343 = smul.addr %s342, 2
          %s344 = smul.addr %s343, 8
          %s345 = scalar_lea.vmem %s2, %s344
        $region52: #{tpu_custom_call.1} parent=39 // pred_fallthru
          _
        // Predicated region
        $region53: #{tpu_custom_call.1} parent=39 // pred_check
          %p346 = pneg %p118
        $region54: #{tpu_custom_call.1} parent=39 // pred_check_branch
          %348 = sbr.rel (%p346) target = $region56
        $region55: #{tpu_custom_call.1} parent=39 // pred_region
          %p349 = scmp.lt.s32.totalorder %s20, 1
          %s350 = scalar_select %p349, %s20, 1
          %s351 = smul.addr %s350, 4
          %s352 = smul.addr %s351, 8
          %s353 = scalar_lea.vmem %s3, %s352
        $region56: #{tpu_custom_call.1} parent=39 // pred_fallthru
          _
      $region40: #{tpu_custom_call.1} parent=5 // pred_fallthru
        _
      %p354 = scmp.le.s32.totalorder 1, %s20
      %p355 = scmp.lt.s32.totalorder %s20, 3
      %p356 = pnand %p354, %p355
      %p357 = pneg %p356
      // Predicated region
      $region57: #{tpu_custom_call.1} parent=5 // pred_check
        _
      $region58: #{tpu_custom_call.1} parent=5 // pred_check_branch
        %359 = sbr.rel (%p356) target = $region60
      $region59: #{tpu_custom_call.1} parent=5 // pred_region
        %s360 = ssub.s32 %s20, 1
        // Predicated region
        $region61: #{tpu_custom_call.1} parent=59 // pred_check
          %p361 = pneg %p250
        $region62: #{tpu_custom_call.1} parent=59 // pred_check_branch
          %363 = sbr.rel (%p361) target = $region64
        $region63: #{tpu_custom_call.1} parent=59 // pred_region
          %364 = dma.done [#allocation3], 2816
        $region64: #{tpu_custom_call.1} parent=59 // pred_fallthru
          _
        %p365 = scmp.lt.s32.totalorder %s25, 1
        %s366 = scalar_select %p365, %s25, 1
        %s367 = smul.addr %s366, 2
        %s368 = smul.addr %s367, 4
        %s369 = scalar_lea.vmem %s0, %s368
        %p370 = pneg %p46
        %p371 = pneg %p43
        %p372 = scmp.lt.s32.totalorder %s25, 1
        %s373 = scalar_select %p372, %s25, 1
        %s374 = smul.addr %s373, 8
        %s375 = scalar_lea.vmem %s1, %s374
        %p376 = pneg %p72
        %p377 = pneg %p69
        %p378 = scmp.lt.s32.totalorder %s25, 1
        %s379 = scalar_select %p378, %s25, 1
        %s380 = smul.addr %s379, 2
        %s381 = smul.addr %s380, 8
        %s382 = scalar_lea.vmem %s2, %s381
        %p383 = pneg %p98
        %p384 = pneg %p95
        %p385 = scmp.lt.s32.totalorder %s25, 1
        %s386 = scalar_select %p385, %s25, 1
        %s387 = smul.addr %s386, 4
        %s388 = smul.addr %s387, 8
        %s389 = scalar_lea.vmem %s3, %s388
        %p390 = pneg %p124
        %p391 = pneg %p121
        %p392 = pneg %p145
        %p393 = pneg %p142
        %p394 = pneg %p166
        %p395 = pneg %p163
        %p396 = pneg %p187
        %p397 = pneg %p184
        %p398 = pneg %p208
        %p399 = pneg %p205
        %p400 = pneg %p229
        %p401 = pneg %p226
        %p402 = pneg %p250
        %p403 = pneg %p247
        %p404 = pneg %p276
        %p405 = pneg %p273
        %s406 = sand.u32 %s263, 1
        %s407 = scalar_lea.sflag [#allocation4], %s406
        %s408 = sand.u32 %s263, 1
        %s409 = smul.addr %s408, 32
        %s410 = scalar_lea.vmem [#allocation5], %s409
        %p411 = scmp.lt.s32.totalorder %s25, 1
        %s412 = scalar_select %p411, %s25, 1
        %s413 = smul.addr %s412, 2
        %s414 = smul.addr %s413, 4
        %s415 = scalar_lea.vmem %s0, %s414
        %p416 = scmp.lt.s32.totalorder %s25, 1
        %s417 = scalar_select %p416, %s25, 1
        %s418 = smul.addr %s417, 8
        %s419 = scalar_lea.vmem %s1, %s418
        %p420 = scmp.lt.s32.totalorder %s25, 1
        %s421 = scalar_select %p420, %s25, 1
        %s422 = smul.addr %s421, 2
        %s423 = smul.addr %s422, 8
        %s424 = scalar_lea.vmem %s2, %s423
        %p425 = scmp.lt.s32.totalorder %s25, 1
        %s426 = scalar_select %p425, %s25, 1
        %s427 = smul.addr %s426, 4
        %s428 = smul.addr %s427, 8
        %s429 = scalar_lea.vmem %s3, %s428
        %v430 = vld [vmem:[%s4] sm:$0xff]
        %v431 = vld [vmem:[%s4 + $0x8] sm:$0xff]
        %v432 = vld [vmem:[%s415] sm:$0xff]
        %v433 = vld [vmem:[%s5] sm:$0xff]
        %v434 = vld [vmem:[%s5 + $0x8] sm:$0xff]
        %v435 = vld [vmem:[%s419] sm:$0xff]
        %vm436 = vcmask 64512
        %v438 = vsel %vm436, %v433, 0
        %v441 = vsel %vm436, %v434, 0
        %443 = vmatprep.subr.mxu0 0.0
        %444 = vmatpush1.msra.mxu0 0.0
        %445 = vmatprep.subr.mxu0 0.0
        %446 = vmatpush1.msra.mxu0 0.0
        %447 = vmatprep.subr.mxu0 0.0
        %448 = vmatpush1.msra.mxu0 0.0
        %449 = vmatprep.subr.mxu0 0.0
        %450 = vmatpush1.msra.mxu0 0.0
        %451 = vmatprep.subr.mxu0 0.0
        %452 = vmatpush1.msra.mxu0 0.0
        %453 = vmatprep.subr.mxu0 0.0
        %454 = vmatpush1.msra.mxu0 0.0
        %455 = vmatprep.subr.mxu0 0.0
        %456 = vmatpush1.msra.mxu0 0.0
        %457 = vmatprep.subr.mxu0 0.0
        %458 = vmatpush1.msra.mxu0 0.0
        %459 = vmatprep.subr.mxu0 0.0
        %460 = vmatpush1.msra.mxu0 0.0
        %461 = vmatprep.subr.mxu0 0.0
        %462 = vmatpush1.msra.mxu0 0.0
        %463 = vmatprep.subr.mxu0 0.0
        %464 = vmatpush1.msra.mxu0 0.0
        %465 = vmatprep.subr.mxu0 0.0
        %466 = vmatpush1.msra.mxu0 0.0
        %467 = vmatprep.subr.mxu0 0.0
        %468 = vmatpush1.msra.mxu0 0.0
        %469 = vmatprep.subr.mxu0 0.0
        %470 = vmatpush1.msra.mxu0 0.0
        %471 = vmatprep.subr.mxu0 0.0
        %472 = vmatpush1.msra.mxu0 0.0
        %473 = vmatprep.subr.mxu0 0.0
        %474 = vmatpush1.msra.mxu0 %v435
        %475 = vmatprep.subr.mxu0 0.0
        %476 = vmatpush2.msra.mxu0 0.0
        %477 = vmatprep.subr.mxu0 0.0
        %478 = vmatpush2.msra.mxu0 0.0
        %479 = vmatprep.subr.mxu0 0.0
        %480 = vmatpush2.msra.mxu0 0.0
        %481 = vmatprep.subr.mxu0 0.0
        %482 = vmatpush2.msra.mxu0 0.0
        %483 = vmatprep.subr.mxu0 0.0
        %484 = vmatpush2.msra.mxu0 0.0
        %485 = vmatprep.subr.mxu0 0.0
        %486 = vmatpush2.msra.mxu0 0.0
        %487 = vmatprep.subr.mxu0 0.0
        %488 = vmatpush2.msra.mxu0 0.0
        %489 = vmatprep.subr.mxu0 0.0
        %490 = vmatpush2.msra.mxu0 0.0
        %491 = vmatprep.subr.mxu0 0.0
        %492 = vmatpush2.msra.mxu0 0.0
        %493 = vmatprep.subr.mxu0 0.0
        %494 = vmatpush2.msra.mxu0 0.0
        %495 = vmatprep.subr.mxu0 0.0
        %496 = vmatpush2.msra.mxu0 0.0
        %497 = vmatprep.subr.mxu0 0.0
        %498 = vmatpush2.msra.mxu0 0.0
        %499 = vmatprep.subr.mxu0 0.0
        %500 = vmatpush2.msra.mxu0 0.0
        %501 = vmatprep.subr.mxu0 0.0
        %502 = vmatpush2.msra.mxu0 0.0
        %503 = vmatprep.subr.mxu0 0.0
        %504 = vmatpush2.msra.mxu0 0.0
        %505 = vmatprep.subr.mxu0 0.0
        %506 = vmatpush2.msra.mxu0 0.0
        %507 = vmatprep.mubr.f32.mxu0 0.0
        %508 = vmatmul.mubr.f32.gmra.mxu0 %v438
        %v509 = vpop.f32.mrf.mxu0
        %v510 = vadd.f32 0.0, %v509
        %v511 = vpop.f32.mrf.mxu0
        %512 = vmatprep.mubr.f32.mxu0 0.0
        %513 = vmatmul.mubr.f32.gmra.mxu0 %v441
        %v514 = vpop.f32.mrf.mxu0
        %v515 = vadd.f32 0.0, %v514
        %v516 = vpop.f32.mrf.mxu0
        %517 = vdwg.mxu0
        %v518 = vld [vmem:[%s6] sm:$0xff]
        %v519 = vld [vmem:[%s6 + $0x8] sm:$0xff]
        %v520 = vld [vmem:[%s424] sm:$0xff]
        %v521 = vld [vmem:[%s424 + $0x8] sm:$0xff]
        %vm522 = vcmask 130048
        %v524 = vsel %vm522, %v518, 0
        %v527 = vsel %vm522, %v519, 0
        %529 = vmatprep.subr.mxu0 0.0
        %530 = vmatpush1.msra.mxu0 0.0
        %531 = vmatprep.subr.mxu0 0.0
        %532 = vmatpush1.msra.mxu0 0.0
        %533 = vmatprep.subr.mxu0 0.0
        %534 = vmatpush1.msra.mxu0 0.0
        %535 = vmatprep.subr.mxu0 0.0
        %536 = vmatpush1.msra.mxu0 0.0
        %537 = vmatprep.subr.mxu0 0.0
        %538 = vmatpush1.msra.mxu0 0.0
        %539 = vmatprep.subr.mxu0 0.0
        %540 = vmatpush1.msra.mxu0 0.0
        %541 = vmatprep.subr.mxu0 0.0
        %542 = vmatpush1.msra.mxu0 0.0
        %543 = vmatprep.subr.mxu0 0.0
        %544 = vmatpush1.msra.mxu0 0.0
        %545 = vmatprep.subr.mxu0 0.0
        %546 = vmatpush1.msra.mxu0 0.0
        %547 = vmatprep.subr.mxu0 0.0
        %548 = vmatpush1.msra.mxu0 0.0
        %549 = vmatprep.subr.mxu0 0.0
        %550 = vmatpush1.msra.mxu0 0.0
        %551 = vmatprep.subr.mxu0 0.0
        %552 = vmatpush1.msra.mxu0 0.0
        %553 = vmatprep.subr.mxu0 0.0
        %554 = vmatpush1.msra.mxu0 0.0
        %555 = vmatprep.subr.mxu0 0.0
        %556 = vmatpush1.msra.mxu0 0.0
        %557 = vmatprep.subr.mxu0 0.0
        %558 = vmatpush1.msra.mxu0 %v521
        %559 = vmatprep.subr.mxu0 0.0
        %560 = vmatpush1.msra.mxu0 %v520
        %561 = vmatprep.subr.mxu0 0.0
        %562 = vmatpush2.msra.mxu0 0.0
        %563 = vmatprep.subr.mxu0 0.0
        %564 = vmatpush2.msra.mxu0 0.0
        %565 = vmatprep.subr.mxu0 0.0
        %566 = vmatpush2.msra.mxu0 0.0
        %567 = vmatprep.subr.mxu0 0.0
        %568 = vmatpush2.msra.mxu0 0.0
        %569 = vmatprep.subr.mxu0 0.0
        %570 = vmatpush2.msra.mxu0 0.0
        %571 = vmatprep.subr.mxu0 0.0
        %572 = vmatpush2.msra.mxu0 0.0
        %573 = vmatprep.subr.mxu0 0.0
        %574 = vmatpush2.msra.mxu0 0.0
        %575 = vmatprep.subr.mxu0 0.0
        %576 = vmatpush2.msra.mxu0 0.0
        %577 = vmatprep.subr.mxu0 0.0
        %578 = vmatpush2.msra.mxu0 0.0
        %579 = vmatprep.subr.mxu0 0.0
        %580 = vmatpush2.msra.mxu0 0.0
        %581 = vmatprep.subr.mxu0 0.0
        %582 = vmatpush2.msra.mxu0 0.0
        %583 = vmatprep.subr.mxu0 0.0
        %584 = vmatpush2.msra.mxu0 0.0
        %585 = vmatprep.subr.mxu0 0.0
        %586 = vmatpush2.msra.mxu0 0.0
        %587 = vmatprep.subr.mxu0 0.0
        %588 = vmatpush2.msra.mxu0 0.0
        %589 = vmatprep.subr.mxu0 0.0
        %590 = vmatpush2.msra.mxu0 0.0
        %591 = vmatprep.subr.mxu0 0.0
        %592 = vmatpush2.msra.mxu0 0.0
        %593 = vmatprep.mubr.f32.mxu0 0.0
        %594 = vmatmul.mubr.f32.gmra.mxu0 %v524
        %v595 = vpop.f32.mrf.mxu0
        %v596 = vadd.f32 0.0, %v595
        %v597 = vpop.f32.mrf.mxu0
        %598 = vmatprep.mubr.f32.mxu0 0.0
        %599 = vmatmul.mubr.f32.gmra.mxu0 %v527
        %v600 = vpop.f32.mrf.mxu0
        %v601 = vadd.f32 0.0, %v600
        %v602 = vpop.f32.mrf.mxu0
        %603 = vdwg.mxu0
        %v604 = vld [vmem:[%s7] sm:$0xff]
        %v605 = vld [vmem:[%s7 + $0x8] sm:$0xff]
        %v606 = vld [vmem:[%s429] sm:$0xff]
        %v607 = vld [vmem:[%s429 + $0x8] sm:$0xff]
        %v608 = vld [vmem:[%s429 + $0x10] sm:$0xff]
        %v609 = vld [vmem:[%s429 + $0x18] sm:$0xff]
        %vm610 = vcmask 261120
        %v612 = vsel %vm610, %v604, 0
        %v615 = vsel %vm610, %v605, 0
        %617 = vmatprep.subr.mxu0 0.0
        %618 = vmatpush1.msra.mxu0 0.0
        %619 = vmatprep.subr.mxu0 0.0
        %620 = vmatpush1.msra.mxu0 0.0
        %621 = vmatprep.subr.mxu0 0.0
        %622 = vmatpush1.msra.mxu0 0.0
        %623 = vmatprep.subr.mxu0 0.0
        %624 = vmatpush1.msra.mxu0 0.0
        %625 = vmatprep.subr.mxu0 0.0
        %626 = vmatpush1.msra.mxu0 0.0
        %627 = vmatprep.subr.mxu0 0.0
        %628 = vmatpush1.msra.mxu0 0.0
        %629 = vmatprep.subr.mxu0 0.0
        %630 = vmatpush1.msra.mxu0 0.0
        %631 = vmatprep.subr.mxu0 0.0
        %632 = vmatpush1.msra.mxu0 0.0
        %633 = vmatprep.subr.mxu0 0.0
        %634 = vmatpush1.msra.mxu0 0.0
        %635 = vmatprep.subr.mxu0 0.0
        %636 = vmatpush1.msra.mxu0 0.0
        %637 = vmatprep.subr.mxu0 0.0
        %638 = vmatpush1.msra.mxu0 0.0
        %639 = vmatprep.subr.mxu0 0.0
        %640 = vmatpush1.msra.mxu0 0.0
        %641 = vmatprep.subr.mxu0 0.0
        %642 = vmatpush1.msra.mxu0 %v609
        %643 = vmatprep.subr.mxu0 0.0
        %644 = vmatpush1.msra.mxu0 %v608
        %645 = vmatprep.subr.mxu0 0.0
        %646 = vmatpush1.msra.mxu0 %v607
        %647 = vmatprep.subr.mxu0 0.0
        %648 = vmatpush1.msra.mxu0 %v606
        %649 = vmatprep.subr.mxu0 0.0
        %650 = vmatpush2.msra.mxu0 0.0
        %651 = vmatprep.subr.mxu0 0.0
        %652 = vmatpush2.msra.mxu0 0.0
        %653 = vmatprep.subr.mxu0 0.0
        %654 = vmatpush2.msra.mxu0 0.0
        %655 = vmatprep.subr.mxu0 0.0
        %656 = vmatpush2.msra.mxu0 0.0
        %657 = vmatprep.subr.mxu0 0.0
        %658 = vmatpush2.msra.mxu0 0.0
        %659 = vmatprep.subr.mxu0 0.0
        %660 = vmatpush2.msra.mxu0 0.0
        %661 = vmatprep.subr.mxu0 0.0
        %662 = vmatpush2.msra.mxu0 0.0
        %663 = vmatprep.subr.mxu0 0.0
        %664 = vmatpush2.msra.mxu0 0.0
        %665 = vmatprep.subr.mxu0 0.0
        %666 = vmatpush2.msra.mxu0 0.0
        %667 = vmatprep.subr.mxu0 0.0
        %668 = vmatpush2.msra.mxu0 0.0
        %669 = vmatprep.subr.mxu0 0.0
        %670 = vmatpush2.msra.mxu0 0.0
        %671 = vmatprep.subr.mxu0 0.0
        %672 = vmatpush2.msra.mxu0 0.0
        %673 = vmatprep.subr.mxu0 0.0
        %674 = vmatpush2.msra.mxu0 0.0
        %675 = vmatprep.subr.mxu0 0.0
        %676 = vmatpush2.msra.mxu0 0.0
        %677 = vmatprep.subr.mxu0 0.0
        %678 = vmatpush2.msra.mxu0 0.0
        %679 = vmatprep.subr.mxu0 0.0
        %680 = vmatpush2.msra.mxu0 0.0
        %681 = vmatprep.mubr.f32.mxu0 0.0
        %682 = vmatmul.mubr.f32.gmra.mxu0 %v612
        %v683 = vpop.f32.mrf.mxu0
        %v684 = vadd.f32 0.0, %v683
        %v685 = vpop.f32.mrf.mxu0
        %686 = vmatprep.mubr.f32.mxu0 0.0
        %687 = vmatmul.mubr.f32.gmra.mxu0 %v615
        %v688 = vpop.f32.mrf.mxu0
        %v689 = vadd.f32 0.0, %v688
        %v690 = vpop.f32.mrf.mxu0
        %691 = vdwg.mxu0
        %v692 = vld [vmem:[#allocation2] sm:$0xff]
        %v693 = vld [vmem:[#allocation2 + $0x8] sm:$0xff]
        %v694 = vld [vmem:[#allocation2 + $0x10] sm:$0xff]
        %v695 = vld [vmem:[#allocation2 + $0x18] sm:$0xff]
        %v696 = vld [vmem:[#allocation2 + $0x20] sm:$0xff]
        %v697 = vld [vmem:[#allocation2 + $0x28] sm:$0xff]
        %v698 = vld [vmem:[#allocation2 + $0x30] sm:$0xff]
        %v699 = vld [vmem:[#allocation2 + $0x38] sm:$0xff]
        %v700 = vld [vmem:[#allocation2 + $0x40] sm:$0xff]
        %v701 = vld [vmem:[#allocation2 + $0x48] sm:$0xff]
        %v702 = vld [vmem:[#allocation2 + $0x50] sm:$0xff]
        %v703 = vld [vmem:[#allocation2 + $0x58] sm:$0xff]
        %v704 = vld [vmem:[#allocation2 + $0x60] sm:$0xff]
        %v705 = vld [vmem:[#allocation2 + $0x68] sm:$0xff]
        %v706 = vld [vmem:[#allocation2 + $0x70] sm:$0xff]
        %v707 = vld [vmem:[#allocation2 + $0x78] sm:$0xff]
        %vm708 = vcmask 523264
        %v710 = vsel %vm708, %v510, 0
        %v713 = vsel %vm708, %v515, 0
        %715 = vmatprep.subr.mxu0 0.0
        %716 = vmatpush1.msra.mxu0 0.0
        %717 = vmatprep.subr.mxu0 0.0
        %718 = vmatpush1.msra.mxu0 0.0
        %719 = vmatprep.subr.mxu0 0.0
        %720 = vmatpush1.msra.mxu0 0.0
        %721 = vmatprep.subr.mxu0 0.0
        %722 = vmatpush1.msra.mxu0 0.0
        %723 = vmatprep.subr.mxu0 0.0
        %724 = vmatpush1.msra.mxu0 0.0
        %725 = vmatprep.subr.mxu0 0.0
        %726 = vmatpush1.msra.mxu0 0.0
        %727 = vmatprep.subr.mxu0 0.0
        %728 = vmatpush1.msra.mxu0 0.0
        %729 = vmatprep.subr.mxu0 0.0
        %730 = vmatpush1.msra.mxu0 0.0
        %731 = vmatprep.subr.mxu0 %v707
        %732 = vmatpush1.msra.mxu0 %v706
        %733 = vmatprep.subr.mxu0 %v705
        %734 = vmatpush1.msra.mxu0 %v704
        %735 = vmatprep.subr.mxu0 %v703
        %736 = vmatpush1.msra.mxu0 %v702
        %737 = vmatprep.subr.mxu0 %v701
        %738 = vmatpush1.msra.mxu0 %v700
        %739 = vmatprep.subr.mxu0 %v699
        %740 = vmatpush1.msra.mxu0 %v698
        %741 = vmatprep.subr.mxu0 %v697
        %742 = vmatpush1.msra.mxu0 %v696
        %743 = vmatprep.subr.mxu0 %v695
        %744 = vmatpush1.msra.mxu0 %v694
        %745 = vmatprep.subr.mxu0 %v693
        %746 = vmatpush1.msra.mxu0 %v692
        %747 = vmatprep.subr.mxu0 0.0
        %748 = vmatpush2.msra.mxu0 0.0
        %749 = vmatprep.subr.mxu0 0.0
        %750 = vmatpush2.msra.mxu0 0.0
        %751 = vmatprep.subr.mxu0 0.0
        %752 = vmatpush2.msra.mxu0 0.0
        %753 = vmatprep.subr.mxu0 0.0
        %754 = vmatpush2.msra.mxu0 0.0
        %755 = vmatprep.subr.mxu0 0.0
        %756 = vmatpush2.msra.mxu0 0.0
        %757 = vmatprep.subr.mxu0 0.0
        %758 = vmatpush2.msra.mxu0 0.0
        %759 = vmatprep.subr.mxu0 0.0
        %760 = vmatpush2.msra.mxu0 0.0
        %761 = vmatprep.subr.mxu0 0.0
        %762 = vmatpush2.msra.mxu0 0.0
        %763 = vmatprep.subr.mxu0 0.0
        %764 = vmatpush2.msra.mxu0 0.0
        %765 = vmatprep.subr.mxu0 0.0
        %766 = vmatpush2.msra.mxu0 0.0
        %767 = vmatprep.subr.mxu0 0.0
        %768 = vmatpush2.msra.mxu0 0.0
        %769 = vmatprep.subr.mxu0 0.0
        %770 = vmatpush2.msra.mxu0 0.0
        %771 = vmatprep.subr.mxu0 0.0
        %772 = vmatpush2.msra.mxu0 0.0
        %773 = vmatprep.subr.mxu0 0.0
        %774 = vmatpush2.msra.mxu0 0.0
        %775 = vmatprep.subr.mxu0 0.0
        %776 = vmatpush2.msra.mxu0 0.0
        %777 = vmatprep.subr.mxu0 0.0
        %778 = vmatpush2.msra.mxu0 0.0
        %779 = vmatprep.mubr.f32.mxu0 0.0
        %780 = vmatmul.mubr.f32.gmra.mxu0 %v710
        %v781 = vpop.f32.mrf.mxu0
        %v782 = vadd.f32 0.0, %v781
        %v783 = vpop.f32.mrf.mxu0
        %v784 = vadd.f32 0.0, %v783
        %785 = vmatprep.mubr.f32.mxu0 0.0
        %786 = vmatmul.mubr.f32.gmra.mxu0 %v713
        %v787 = vpop.f32.mrf.mxu0
        %v788 = vadd.f32 0.0, %v787
        %v789 = vpop.f32.mrf.mxu0
        %v790 = vadd.f32 0.0, %v789
        %791 = vdwg.mxu0
        %v793 = vcombine.high %v432, %v432
        %vm794 = vcmask 31744
        %v796 = vsel %vm794, %v430, 0
        %v799 = vsel %vm794, %v431, 0
        %vm801 = vcmask 1043456
        %v802 = vsel %vm801, %v432, 0
        %v804 = vsel %vm801, %v793, 0
        %806 = vmatprep.subr.mxu0 0.0
        %807 = vmatpush1.msra.mxu0 0.0
        %808 = vmatprep.subr.mxu0 0.0
        %809 = vmatpush1.msra.mxu0 0.0
        %810 = vmatprep.subr.mxu0 0.0
        %811 = vmatpush1.msra.mxu0 0.0
        %812 = vmatprep.subr.mxu0 0.0
        %813 = vmatpush1.msra.mxu0 0.0
        %814 = vmatprep.subr.mxu0 0.0
        %815 = vmatpush1.msra.mxu0 0.0
        %816 = vmatprep.subr.mxu0 0.0
        %817 = vmatpush1.msra.mxu0 0.0
        %818 = vmatprep.subr.mxu0 0.0
        %819 = vmatpush1.msra.mxu0 0.0
        %820 = vmatprep.subr.mxu0 0.0
        %821 = vmatpush1.msra.mxu0 0.0
        %822 = vmatprep.subr.mxu0 0.0
        %823 = vmatpush1.msra.mxu0 0.0
        %824 = vmatprep.subr.mxu0 0.0
        %825 = vmatpush1.msra.mxu0 0.0
        %826 = vmatprep.subr.mxu0 0.0
        %827 = vmatpush1.msra.mxu0 0.0
        %828 = vmatprep.subr.mxu0 0.0
        %829 = vmatpush1.msra.mxu0 0.0
        %830 = vmatprep.subr.mxu0 0.0
        %831 = vmatpush1.msra.mxu0 0.0
        %832 = vmatprep.subr.mxu0 0.0
        %833 = vmatpush1.msra.mxu0 0.0
        %834 = vmatprep.subr.mxu0 0.0
        %835 = vmatpush1.msra.mxu0 0.0
        %836 = vmatprep.subr.mxu0 %v804
        %837 = vmatpush1.msra.mxu0 %v802
        %838 = vmatprep.subr.mxu0 0.0
        %839 = vmatpush2.msra.mxu0 0.0
        %840 = vmatprep.subr.mxu0 0.0
        %841 = vmatpush2.msra.mxu0 0.0
        %842 = vmatprep.subr.mxu0 0.0
        %843 = vmatpush2.msra.mxu0 0.0
        %844 = vmatprep.subr.mxu0 0.0
        %845 = vmatpush2.msra.mxu0 0.0
        %846 = vmatprep.subr.mxu0 0.0
        %847 = vmatpush2.msra.mxu0 0.0
        %848 = vmatprep.subr.mxu0 0.0
        %849 = vmatpush2.msra.mxu0 0.0
        %850 = vmatprep.subr.mxu0 0.0
        %851 = vmatpush2.msra.mxu0 0.0
        %852 = vmatprep.subr.mxu0 0.0
        %853 = vmatpush2.msra.mxu0 0.0
        %854 = vmatprep.subr.mxu0 0.0
        %855 = vmatpush2.msra.mxu0 0.0
        %856 = vmatprep.subr.mxu0 0.0
        %857 = vmatpush2.msra.mxu0 0.0
        %858 = vmatprep.subr.mxu0 0.0
        %859 = vmatpush2.msra.mxu0 0.0
        %860 = vmatprep.subr.mxu0 0.0
        %861 = vmatpush2.msra.mxu0 0.0
        %862 = vmatprep.subr.mxu0 0.0
        %863 = vmatpush2.msra.mxu0 0.0
        %864 = vmatprep.subr.mxu0 0.0
        %865 = vmatpush2.msra.mxu0 0.0
        %866 = vmatprep.subr.mxu0 0.0
        %867 = vmatpush2.msra.mxu0 0.0
        %868 = vmatprep.subr.mxu0 0.0
        %869 = vmatpush2.msra.mxu0 0.0
        %870 = vmatprep.mubr.f32.mxu0 0.0
        %871 = vmatmul.mubr.f32.gmra.mxu0 %v796
        %v872 = vpop.f32.mrf.mxu0
        %v873 = vadd.f32 %v782, %v872
        %v874 = vpop.f32.mrf.mxu0
        %v875 = vadd.f32 %v784, %v874
        %876 = vmatprep.mubr.f32.mxu0 0.0
        %877 = vmatmul.mubr.f32.gmra.mxu0 %v799
        %v878 = vpop.f32.mrf.mxu0
        %v879 = vadd.f32 %v788, %v878
        %v880 = vpop.f32.mrf.mxu0
        %v881 = vadd.f32 %v790, %v880
        %882 = vdwg.mxu0
        %v883 = vld [vmem:[#allocation2 + $0x80] sm:$0xff]
        %v884 = vld [vmem:[#allocation2 + $0x88] sm:$0xff]
        %v885 = vld [vmem:[#allocation2 + $0x90] sm:$0xff]
        %v886 = vld [vmem:[#allocation2 + $0x98] sm:$0xff]
        %v888 = vsel %vm522, %v596, 0
        %v891 = vsel %vm522, %v601, 0
        %893 = vmatprep.subr.mxu0 0.0
        %894 = vmatpush1.msra.mxu0 0.0
        %895 = vmatprep.subr.mxu0 0.0
        %896 = vmatpush1.msra.mxu0 0.0
        %897 = vmatprep.subr.mxu0 0.0
        %898 = vmatpush1.msra.mxu0 0.0
        %899 = vmatprep.subr.mxu0 0.0
        %900 = vmatpush1.msra.mxu0 0.0
        %901 = vmatprep.subr.mxu0 0.0
        %902 = vmatpush1.msra.mxu0 0.0
        %903 = vmatprep.subr.mxu0 0.0
        %904 = vmatpush1.msra.mxu0 0.0
        %905 = vmatprep.subr.mxu0 0.0
        %906 = vmatpush1.msra.mxu0 0.0
        %907 = vmatprep.subr.mxu0 0.0
        %908 = vmatpush1.msra.mxu0 0.0
        %909 = vmatprep.subr.mxu0 0.0
        %910 = vmatpush1.msra.mxu0 0.0
        %911 = vmatprep.subr.mxu0 0.0
        %912 = vmatpush1.msra.mxu0 0.0
        %913 = vmatprep.subr.mxu0 0.0
        %914 = vmatpush1.msra.mxu0 0.0
        %915 = vmatprep.subr.mxu0 0.0
        %916 = vmatpush1.msra.mxu0 0.0
        %917 = vmatprep.subr.mxu0 0.0
        %918 = vmatpush1.msra.mxu0 0.0
        %919 = vmatprep.subr.mxu0 0.0
        %920 = vmatpush1.msra.mxu0 0.0
        %921 = vmatprep.subr.mxu0 %v886
        %922 = vmatpush1.msra.mxu0 %v885
        %923 = vmatprep.subr.mxu0 %v884
        %924 = vmatpush1.msra.mxu0 %v883
        %925 = vmatprep.subr.mxu0 0.0
        %926 = vmatpush2.msra.mxu0 0.0
        %927 = vmatprep.subr.mxu0 0.0
        %928 = vmatpush2.msra.mxu0 0.0
        %929 = vmatprep.subr.mxu0 0.0
        %930 = vmatpush2.msra.mxu0 0.0
        %931 = vmatprep.subr.mxu0 0.0
        %932 = vmatpush2.msra.mxu0 0.0
        %933 = vmatprep.subr.mxu0 0.0
        %934 = vmatpush2.msra.mxu0 0.0
        %935 = vmatprep.subr.mxu0 0.0
        %936 = vmatpush2.msra.mxu0 0.0
        %937 = vmatprep.subr.mxu0 0.0
        %938 = vmatpush2.msra.mxu0 0.0
        %939 = vmatprep.subr.mxu0 0.0
        %940 = vmatpush2.msra.mxu0 0.0
        %941 = vmatprep.subr.mxu0 0.0
        %942 = vmatpush2.msra.mxu0 0.0
        %943 = vmatprep.subr.mxu0 0.0
        %944 = vmatpush2.msra.mxu0 0.0
        %945 = vmatprep.subr.mxu0 0.0
        %946 = vmatpush2.msra.mxu0 0.0
        %947 = vmatprep.subr.mxu0 0.0
        %948 = vmatpush2.msra.mxu0 0.0
        %949 = vmatprep.subr.mxu0 0.0
        %950 = vmatpush2.msra.mxu0 0.0
        %951 = vmatprep.subr.mxu0 0.0
        %952 = vmatpush2.msra.mxu0 0.0
        %953 = vmatprep.subr.mxu0 0.0
        %954 = vmatpush2.msra.mxu0 0.0
        %955 = vmatprep.subr.mxu0 0.0
        %956 = vmatpush2.msra.mxu0 0.0
        %957 = vmatprep.mubr.f32.mxu0 0.0
        %958 = vmatmul.mubr.f32.gmra.mxu0 %v888
        %v959 = vpop.f32.mrf.mxu0
        %v960 = vadd.f32 0.0, %v959
        %v961 = vpop.f32.mrf.mxu0
        %v962 = vadd.f32 0.0, %v961
        %963 = vmatprep.mubr.f32.mxu0 0.0
        %964 = vmatmul.mubr.f32.gmra.mxu0 %v891
        %v965 = vpop.f32.mrf.mxu0
        %v966 = vadd.f32 0.0, %v965
        %v967 = vpop.f32.mrf.mxu0
        %v968 = vadd.f32 0.0, %v967
        %969 = vdwg.mxu0
        %v970 = vadd.f32 %v873, %v960
        %v971 = vadd.f32 %v875, %v962
        %v972 = vadd.f32 %v879, %v966
        %v973 = vadd.f32 %v881, %v968
        %v974 = vld [vmem:[#allocation2 + $0xa0] sm:$0xf]
        %v975 = vld [vmem:[#allocation2 + $0xa8] sm:$0xf]
        %v977 = vsel %vm794, %v684, 0
        %v980 = vsel %vm794, %v689, 0
        %v983 = vsel %vm801, %v974, 0
        %v986 = vsel %vm801, %v975, 0
        %988 = vmatprep.subr.mxu0 0.0
        %989 = vmatpush1.msra.mxu0 0.0
        %990 = vmatprep.subr.mxu0 0.0
        %991 = vmatpush1.msra.mxu0 0.0
        %992 = vmatprep.subr.mxu0 0.0
        %993 = vmatpush1.msra.mxu0 0.0
        %994 = vmatprep.subr.mxu0 0.0
        %995 = vmatpush1.msra.mxu0 0.0
        %996 = vmatprep.subr.mxu0 0.0
        %997 = vmatpush1.msra.mxu0 0.0
        %998 = vmatprep.subr.mxu0 0.0
        %999 = vmatpush1.msra.mxu0 0.0
        %1000 = vmatprep.subr.mxu0 0.0
        %1001 = vmatpush1.msra.mxu0 0.0
        %1002 = vmatprep.subr.mxu0 0.0
        %1003 = vmatpush1.msra.mxu0 0.0
        %1004 = vmatprep.subr.mxu0 0.0
        %1005 = vmatpush1.msra.mxu0 0.0
        %1006 = vmatprep.subr.mxu0 0.0
        %1007 = vmatpush1.msra.mxu0 0.0
        %1008 = vmatprep.subr.mxu0 0.0
        %1009 = vmatpush1.msra.mxu0 0.0
        %1010 = vmatprep.subr.mxu0 0.0
        %1011 = vmatpush1.msra.mxu0 0.0
        %1012 = vmatprep.subr.mxu0 0.0
        %1013 = vmatpush1.msra.mxu0 0.0
        %1014 = vmatprep.subr.mxu0 0.0
        %1015 = vmatpush1.msra.mxu0 0.0
        %1016 = vmatprep.subr.mxu0 0.0
        %1017 = vmatpush1.msra.mxu0 0.0
        %1018 = vmatprep.subr.mxu0 %v986
        %1019 = vmatpush1.msra.mxu0 %v983
        %1020 = vmatprep.subr.mxu0 0.0
        %1021 = vmatpush2.msra.mxu0 0.0
        %1022 = vmatprep.subr.mxu0 0.0
        %1023 = vmatpush2.msra.mxu0 0.0
        %1024 = vmatprep.subr.mxu0 0.0
        %1025 = vmatpush2.msra.mxu0 0.0
        %1026 = vmatprep.subr.mxu0 0.0
        %1027 = vmatpush2.msra.mxu0 0.0
        %1028 = vmatprep.subr.mxu0 0.0
        %1029 = vmatpush2.msra.mxu0 0.0
        %1030 = vmatprep.subr.mxu0 0.0
        %1031 = vmatpush2.msra.mxu0 0.0
        %1032 = vmatprep.subr.mxu0 0.0
        %1033 = vmatpush2.msra.mxu0 0.0
        %1034 = vmatprep.subr.mxu0 0.0
        %1035 = vmatpush2.msra.mxu0 0.0
        %1036 = vmatprep.subr.mxu0 0.0
        %1037 = vmatpush2.msra.mxu0 0.0
        %1038 = vmatprep.subr.mxu0 0.0
        %1039 = vmatpush2.msra.mxu0 0.0
        %1040 = vmatprep.subr.mxu0 0.0
        %1041 = vmatpush2.msra.mxu0 0.0
        %1042 = vmatprep.subr.mxu0 0.0
        %1043 = vmatpush2.msra.mxu0 0.0
        %1044 = vmatprep.subr.mxu0 0.0
        %1045 = vmatpush2.msra.mxu0 0.0
        %1046 = vmatprep.subr.mxu0 0.0
        %1047 = vmatpush2.msra.mxu0 0.0
        %1048 = vmatprep.subr.mxu0 0.0
        %1049 = vmatpush2.msra.mxu0 0.0
        %1050 = vmatprep.subr.mxu0 0.0
        %1051 = vmatpush2.msra.mxu0 0.0
        %1052 = vmatprep.mubr.f32.mxu0 0.0
        %1053 = vmatmul.mubr.f32.gmra.mxu0 %v977
        %v1054 = vpop.f32.mrf.mxu0
        %v1055 = vadd.f32 0.0, %v1054
        %v1056 = vpop.f32.mrf.mxu0
        %v1057 = vadd.f32 0.0, %v1056
        %1058 = vmatprep.mubr.f32.mxu0 0.0
        %1059 = vmatmul.mubr.f32.gmra.mxu0 %v980
        %v1060 = vpop.f32.mrf.mxu0
        %v1061 = vadd.f32 0.0, %v1060
        %v1062 = vpop.f32.mrf.mxu0
        %v1063 = vadd.f32 0.0, %v1062
        %1064 = vdwg.mxu0
        %v1065 = vadd.f32 %v970, %v1055
        %v1066 = vadd.f32 %v971, %v1057
        %v1067 = vadd.f32 %v972, %v1061
        %v1068 = vadd.f32 %v973, %v1063
        %v1069 = vld [vmem:[%s8] sm:$0xff]
        %v1070 = vld [vmem:[%s8 + $0x8] sm:$0xff]
        %1072 = vset.pattern.permute.xlu0 0
        %1073 = vperm.xlu0 %1072, %v1069
        %v1074 = vpop.permute.xlu0 %1073
        %1077 = vset.pattern.permute.xlu0 0
        %1078 = vperm.xlu0 %1077, %v1070
        %v1079 = vpop.permute.xlu0 %1078
        %v1081 = vadd.f32 %v1065, %v1074
        %v1082 = vadd.f32 %v1066, %v1074
        %v1083 = vadd.f32 %v1067, %v1079
        %v1084 = vadd.f32 %v1068, %v1079
        %v1085 = vmax.f32 %v1081, 0.0
        %v1086 = vmax.f32 %v1082, 0.0
        %v1087 = vmax.f32 %v1083, 0.0
        %v1088 = vmax.f32 %v1084, 0.0
        %1089 = vst [vmem:[%s410] sm:$0xff] %v1085
        %1090 = vst [vmem:[%s410 + $0x8] sm:$0xff] %v1086
        %1091 = vst [vmem:[%s410 + $0x10] sm:$0xff] %v1087
        %1092 = vst [vmem:[%s410 + $0x18] sm:$0xff] %v1088
        %s1093 = sand.u32 %s263, 1
        %s1094 = scalar_lea.sflag [#allocation4], %s1093
        %s1095 = sand.u32 %s263, 1
        %s1096 = smul.addr %s1095, 32
        %s1097 = scalar_lea.vmem [#allocation5], %s1096
        // Predicated region
        $region65: #{tpu_custom_call.1} parent=59 // pred_check
          %p1098 = pneg %p273
        $region66: #{tpu_custom_call.1} parent=59 // pred_check_branch
          %1100 = sbr.rel (%p1098) target = $region68
        $region67: #{tpu_custom_call.1} parent=59 // pred_region
          %s1102 = ssub.s32 512, 512
          %1103 = vsyncadd %s1094, %s1102
          %s1104 = smul.addr %s25, 4
          %s1105 = smul.addr %s1104, 128
          %s1106 = scalar_lea.hbm %s10, %s1105
          %s1107 = sshll.u32 %s1097, 4
          %s1108 = int_to_ptr.vmem [resolvable:$true] %s1107
          %1113 = dma.vmem_to_hbm [thread:$0]  %s1108, 512, %s1106, %s1094, 256, 256, 16
        $region68: #{tpu_custom_call.1} parent=59 // pred_fallthru
          _
      $region60: #{tpu_custom_call.1} parent=5 // pred_fallthru
        _
      %p1114 = scmp.le.s32.totalorder 2, %s20
      // Predicated region
      $region69: #{tpu_custom_call.1} parent=5 // pred_check
        %p1115 = pneg %p1114
      $region70: #{tpu_custom_call.1} parent=5 // pred_check_branch
        %1117 = sbr.rel (%p1115) target = $region72
      $region71: #{tpu_custom_call.1} parent=5 // pred_region
        %s1118 = ssub.s32 %s20, 2
        // Predicated region
        $region73: #{tpu_custom_call.1} parent=71 // pred_check
          %p1119 = pneg %p279
        $region74: #{tpu_custom_call.1} parent=71 // pred_check_branch
          %1121 = sbr.rel (%p1119) target = $region76
        $region75: #{tpu_custom_call.1} parent=71 // pred_region
          %s1122 = sand.u32 %s264, 1
          %s1123 = scalar_lea.sflag [#allocation4], %s1122
          %s1124 = sand.u32 %s264, 1
          %s1125 = smul.addr %s1124, 32
          %s1126 = scalar_lea.vmem [#allocation5], %s1125
          %1127 = dma.done %s1123, 512
        $region76: #{tpu_custom_call.1} parent=71 // pred_fallthru
          _
      $region72: #{tpu_custom_call.1} parent=5 // pred_fallthru
        _
    $region6: #{tpu_custom_call.1} parent=1 // loop_footer
      %s24 = sadd.s32 1, %s20
    $region7: #{tpu_custom_call.1} parent=1 // loop_footer_branch
      %19 = sbr.rel target = $region3
    $region8: #{tpu_custom_call.1} parent=1 // loop_exit
      _
    %1128 = vsyncpa [#allocation3], 1
    %s1129 = scalar_lea.sflag [#allocation3], 1
    %1130 = vsyncpa %s1129, 1
    %1131 = vsyncpa [#allocation4], 1
    %s1132 = scalar_lea.sflag [#allocation4], 1
    %1133 = vsyncpa %s1132, 1

</llo_original>
